<compile_context>
chip_gen: v5e
topology: v5e:2x2
jax: 0.10.0
libtpu: 0.0.40
codegen_flags: <defaults>
</compile_context>

<pallas_src>
import functools
import math

import numpy as np
import jax
import jax.numpy as jnp
from jax import lax
from jax.experimental import pallas as pl
from jax.experimental.pallas import tpu as pltpu


_SMOOTH_1D = np.asarray([0.25, 0.5, 0.25], dtype=np.float32)
_SMOOTH_3x3 = np.outer(_SMOOTH_1D, _SMOOTH_1D).astype(np.float32)   # exact init


# ---------------------------------------------------------------------------
# Parameter init (matches nn.Conv2d(C, C, groups=C, k=3) with the module's
# deterministic weight / zero bias).
# ---------------------------------------------------------------------------
def init_upsample_params(mode, channels):
    if "learned-3x3" in mode:
        w = jnp.asarray(_SMOOTH_3x3)
        weight = jnp.tile(w[None, None], (channels, 1, 1, 1))   # (C, 1, 3, 3)
        bias = jnp.zeros((channels,), jnp.float32)              # (C,)
        return weight, bias
    return None, None


def _axis_op_matrix(n, smooth, replicate):
    """(2n, n) matrix = nearest 2x upsample, optionally followed by the 1D
    [0.25, 0.5, 0.25] smoothing with replicate or zero boundary handling."""
    m = 2 * n
    u = np.zeros((m, n), dtype=np.float32)
    u[np.arange(m), np.arange(m) // 2] = 1.0
    if not smooth:
        return u
    s = np.zeros((m, m), dtype=np.float32)
    for i in range(m):
        for d, wv in ((-1, 0.25), (0, 0.5), (1, 0.25)):
            j = i + d
            if 0 <= j < m:
                s[i, j] += wv
            elif replicate:
                s[i, min(max(j, 0), m - 1)] += wv
    return (s @ u).astype(np.float32)


def _nearest_matrix(w, s, dtype):
    """(s*W, 4*s*W) 0/1 selector: one matmul performs the full 2x2 nearest
    upsample of s row-packed input rows into 2s row-packed output rows."""
    m = np.zeros((s * w, 4 * s * w), np.float32)
    for p in range(s):
        for j in range(w):
            src = p * w + j
            for q in (2 * p, 2 * p + 1):
                dst = q * 2 * w + 2 * j
                m[src, dst] = 1.0
                m[src, dst + 1] = 1.0
    return jnp.asarray(m, dtype)


def _concrete(a):
    if a is None:
        return None
    try:
        return np.asarray(a)
    except Exception:            # abstract tracer -> cannot specialize
        return None


# ---------------------------------------------------------------------------
# Generation-aware VMEM budgeting (review items 5-8).
# ---------------------------------------------------------------------------
def _vmem_info():
    cap = 0
    try:
        cap = int(getattr(pltpu.get_tpu_info(), "vmem_capacity_bytes", 0) or 0)
    except Exception:
        cap = 0
    if cap <= 0:
        cap = 64 * 1024 * 1024                       # conservative default
    if cap >= 96 * 1024 * 1024:                      # 128 MiB parts: v5e / v6e
        # big blocks, single-TC: no minimum grid-step count
        return 20 * 1024 * 1024, 64 * 1024 * 1024, 1
    # 64 MiB parts (v7x, 2 TCs): smaller blocks + >=4 grid steps so the
    # "parallel" plane axis really shards across both TensorCores.
    return 10 * 1024 * 1024, 40 * 1024 * 1024, 4


def _pick_divisor(n, target):
    target = int(max(1, min(target, n)))
    for b in range(target, 0, -1):
        if n % b == 0:
            return b
    return 1


def _pick_row_block(total, target):
    """Divisor of `total`, multiple of 8 (sublane tile) and <= target;
    falls back to the full extent (always layout-legal)."""
    target = int(max(1, min(target, total)))
    for b in range(target, 0, -1):
        if total % b == 0 and b % 8 == 0:
            return b
    return total


# ---------------------------------------------------------------------------
# Kernels
# ---------------------------------------------------------------------------
def _nearest_kernel(m_ref, x_ref, o_ref):
    # x: (R, s*W)  M: (s*W, 4*s*W)  out: (R, 4*s*W) -- one lane-dense store.
    o_ref[...] = jnp.dot(x_ref[...], m_ref[...],
                         preferred_element_type=jnp.float32).astype(o_ref.dtype)


def _fused_kernel(*refs, bsz, channels, has_bias, merge, cdt):
    # out[b] = A_H @ x[b] @ A_W^T (+ bias)
    if has_bias:
        bias_ref, ah_ref, awt_ref, x_ref, o_ref = refs
    else:
        ah_ref, awt_ref, x_ref, o_ref = refs
        bias_ref = None
    ah = ah_ref[...]                        # (2H, H)
    awt = awt_ref[...]                      # (W, 2W)
    h2, w2 = ah.shape[0], awt.shape[1]
    base = pl.program_id(0) * bsz

    if merge:
        # small sublane-direction matmuls first (operand only HxW), then ONE
        # lane-direction matmul over all planes of the block + a single store.
        t = jnp.concatenate(
            [jnp.dot(ah, x_ref[b].astype(cdt), preferred_element_type=jnp.float32)
             for b in range(bsz)], axis=0)                       # (bsz*2H, W) f32
        y = jnp.dot(t.astype(cdt), awt,
                    preferred_element_type=jnp.float32)          # (bsz*2H, 2W) f32
        # reshaped tensors are f32, so the split is layout-free when 2H % 8 == 0
        o_ref[...] = y.reshape(bsz, h2, w2).astype(o_ref.dtype)
    else:
        for b in range(bsz):
            t = jnp.dot(ah, x_ref[b].astype(cdt),
                        preferred_element_type=jnp.float32)
            y = jnp.dot(t.astype(cdt), awt,
                        preferred_element_type=jnp.float32)
            if has_bias:
                y = y + bias_ref[(base + b) % channels]
            o_ref[b] = y.astype(o_ref.dtype)


def _shift_rows(y, dr, replicate):
    if dr == 0:
        return y
    h2, w2 = y.shape
    if dr < 0:
        edge = y[0:1, :] if replicate else jnp.zeros((1, w2), y.dtype)
        return jnp.concatenate([edge, y[:h2 - 1, :]], axis=0)
    edge = y[h2 - 1:h2, :] if replicate else jnp.zeros((1, w2), y.dtype)
    return jnp.concatenate([y[1:, :], edge], axis=0)


def _shift_cols(y, dc, replicate, first_col, last_col):
    if dc == 0:
        return y
    h2, w2 = y.shape
    r = pltpu.roll(y, (-dc) % w2, 1)
    if dc < 0:
        edge = y[:, 0:1] if replicate else jnp.zeros((h2, 1), y.dtype)
        return jnp.where(first_col, edge, r)
    edge = y[:, w2 - 1:w2] if replicate else jnp.zeros((h2, 1), y.dtype)
    return jnp.where(last_col, edge, r)


def _general_kernel(w_ref, b_ref, uh_ref, uwt_ref, x_ref, o_ref, *,
                    bsz, channels, replicate_pad):
    # Arbitrary learned per-channel 3x3 weights: 9-tap path.
    uh = uh_ref[...]                       # (2H, H) 0/1
    uwt = uwt_ref[...]                     # (W, 2W) 0/1
    h2, w2 = o_ref.shape[1], o_ref.shape[2]
    base = pl.program_id(0) * bsz
    # hoisted: lane-index masks computed once per kernel invocation
    ci = lax.broadcasted_iota(jnp.int32, (h2, w2), 1)
    first_col = ci == 0
    last_col = ci == (w2 - 1)
    for b in range(bsz):
        x2 = x_ref[b].astype(jnp.float32)
        up = jnp.dot(uh, jnp.dot(x2, uwt, preferred_element_type=jnp.float32),
                     preferred_element_type=jnp.float32)          # (2H, 2W)
        c = (base + b) % channels
        acc = jnp.zeros((h2, w2), jnp.float32)
        for a in range(3):
            row = _shift_rows(up, a - 1, replicate_pad)
            for d in range(3):
                tap = _shift_cols(row, d - 1, replicate_pad, first_col, last_col)
                acc = acc + w_ref[c * 9 + 3 * a + d] * tap
        acc = acc + b_ref[c]
        o_ref[b] = acc.astype(o_ref.dtype)


# ---------------------------------------------------------------------------
# Wrapper
# ---------------------------------------------------------------------------
def upsample(x, mode, weight=None, bias=None, mxu_dtype=None):
    if mode == "bilinear":
        # TODO(synk): bilinear (align_corners=False) path not implemented.
        raise NotImplementedError("bilinear mode not implemented in Pallas kernel")

    N, C, H, W = x.shape
    H2, W2 = 2 * H, 2 * W
    do_conv = "learned-3x3" in mode
    replicate_pad = (mode == "learned-3x3")
    n_planes = N * C
    isz = jnp.dtype(x.dtype).itemsize

    budget, vmem_limit, min_steps = _vmem_info()
    cparams = pltpu.CompilerParams(
        dimension_semantics=("parallel",),
        vmem_limit_bytes=vmem_limit)

    # ----------------- nearest: one lane-dense selector matmul --------------
    if not do_conv:
        s = 32 // math.gcd(W, 32)           # smallest s with 4*s*W % 128 == 0
        if H % s != 0:
            s = 1
        lw_in, lw_out = s * W, 4 * s * W
        rows = n_planes * (H // s)
        x2d = x.reshape(rows, lw_in)        # free reshape (row packing)
        m = _nearest_matrix(W, s, x.dtype)  # 0/1 selector -> exact in any dtype
        per_row = 2 * (lw_in + lw_out) * isz + lw_out * 4 + 128
        target = max(1, (budget - 2 * lw_in * lw_out * isz) // per_row)
        if min_steps > 1:
            target = min(target, max(1, rows // min_steps))
        rb = _pick_row_block(rows, target)
        out = pl.pallas_call(
            _nearest_kernel,
            out_shape=jax.ShapeDtypeStruct((rows, lw_out), x.dtype),
            grid=(rows // rb,),
            in_specs=[pl.BlockSpec((lw_in, lw_out), lambda i: (0, 0)),
                      pl.BlockSpec((rb, lw_in), lambda i: (i, 0))],
            out_specs=pl.BlockSpec((rb, lw_out), lambda i: (i, 0)),
            compiler_params=cparams,
        )(m, x2d)
        return out.reshape(N, C, H2, W2)    # free reshape back

    # ----------------- learned-3x3 paths -------------------------------------
    x_planes = x.reshape(n_planes, H, W)
    if mxu_dtype is None:
        cdt = jnp.bfloat16 if x.dtype == jnp.dtype(jnp.bfloat16) else jnp.float32
    else:
        cdt = jnp.dtype(mxu_dtype)
    cdsz = jnp.dtype(cdt).itemsize

    if weight is None:
        use_fused = True                    # module's default fixed init
    else:
        cw = _concrete(weight)
        use_fused = (cw is not None and tuple(cw.shape) == (C, 1, 3, 3) and
                     np.allclose(np.asarray(cw, np.float32).reshape(C, 3, 3),
                                 np.broadcast_to(_SMOOTH_3x3, (C, 3, 3)),
                                 rtol=0.0, atol=1e-7))
    cb = _concrete(bias)
    has_bias = (bias is not None) and not (cb is not None and not np.any(cb))

    if use_fused:
        ah = jnp.asarray(_axis_op_matrix(H, True, replicate_pad), cdt)       # (2H, H)
        awt = jnp.asarray(_axis_op_matrix(W, True, replicate_pad).T, cdt)    # (W, 2W)
        # VMEM estimate incl. double-buffered blocks and f32 intermediates
        per_plane = H * W * (10 * isz + 3 * cdsz + 24) + 256
        mat_bytes = 2 * (2 * H * H + 2 * W * W) * cdsz
        target = max(1, (budget - mat_bytes) // per_plane)
        target = min(target, 32)            # bound in-kernel unrolling
        if min_steps > 1:
            target = min(target, max(1, n_planes // min_steps))
        bsz = _pick_divisor(n_planes, target)
        merge = ((2 * H) % 8 == 0) and not has_bias
        in_specs, args = [], []
        if has_bias:
            in_specs.append(pl.BlockSpec(memory_space=pltpu.MemorySpace.SMEM))
            args.append(jnp.asarray(bias, jnp.float32).reshape(C))   # (C,) SMEM
        in_specs += [pl.BlockSpec((H2, H), lambda i: (0, 0)),        # A_H
                     pl.BlockSpec((W, W2), lambda i: (0, 0)),        # A_W^T
                     pl.BlockSpec((bsz, H, W), lambda i: (i, 0, 0))]
        args += [ah, awt, x_planes]
        kern = functools.partial(_fused_kernel, bsz=bsz, channels=C,
                                 has_bias=has_bias, merge=merge, cdt=cdt)
        out = pl.pallas_call(
            kern,
            out_shape=jax.ShapeDtypeStruct((n_planes, H2, W2), x.dtype),
            grid=(n_planes // bsz,),
            in_specs=in_specs,
            out_specs=pl.BlockSpec((bsz, H2, W2), lambda i: (i, 0, 0)),
            compiler_params=cparams,
        )(*args)
        return out.reshape(N, C, H2, W2)

    # ----------------- general 9-tap fallback (arbitrary weights) ------------
    if bias is None:
        bias = jnp.zeros((C,), jnp.float32)
    uh = jnp.asarray(_axis_op_matrix(H, False, False), jnp.float32)       # (2H, H)
    uwt = jnp.asarray(_axis_op_matrix(W, False, False).T, jnp.float32)    # (W, 2W)
    per_plane = H * W * (10 * isz + 80) + 256
    target = max(1, budget // per_plane)
    target = min(target, 8)                 # unrolled 9-tap body is large
    if min_steps > 1:
        target = min(target, max(1, n_planes // min_steps))
    bsz = _pick_divisor(n_planes, target)
    w_flat = jnp.asarray(weight, jnp.float32).reshape(C * 9)   # 1D SMEM layout
    b_vec = jnp.asarray(bias, jnp.float32).reshape(C)
    kern = functools.partial(_general_kernel, bsz=bsz, channels=C,
                             replicate_pad=replicate_pad)
    out = pl.pallas_call(
        kern,
        out_shape=jax.ShapeDtypeStruct((n_planes, H2, W2), x.dtype),
        grid=(n_planes // bsz,),
        in_specs=[pl.BlockSpec(memory_space=pltpu.MemorySpace.SMEM),   # weights
                  pl.BlockSpec(memory_space=pltpu.MemorySpace.SMEM),   # bias
                  pl.BlockSpec((H2, H), lambda i: (0, 0)),
                  pl.BlockSpec((W, W2), lambda i: (0, 0)),
                  pl.BlockSpec((bsz, H, W), lambda i: (i, 0, 0))],
        out_specs=pl.BlockSpec((bsz, H2, W2), lambda i: (i, 0, 0)),
        compiler_params=cparams,
    )(w_flat, b_vec, uh, uwt, x_planes)
    return out.reshape(N, C, H2, W2)


# ---------------------------------------------------------------------------
# Pure-JAX reference (mirrors the PyTorch forward).
# ---------------------------------------------------------------------------
def upsample_reference(x, mode, weight=None, bias=None):
    N, C, H, W = x.shape
    up = jnp.repeat(jnp.repeat(x, 2, axis=2), 2, axis=3)
    if "learned-3x3" not in mode:
        return up
    if mode == "learned-3x3":
        p = jnp.pad(up, ((0, 0), (0, 0), (1, 1), (1, 1)), mode="edge")
    else:
        p = jnp.pad(up, ((0, 0), (0, 0), (1, 1), (1, 1)))
    out = jnp.zeros_like(up, dtype=jnp.float32)
    pf = p.astype(jnp.float32)
    wf = jnp.asarray(weight, jnp.float32)
    for a in range(3):
        for b in range(3):
            out = out + wf[None, :, 0, a, b, None, None] * \
                  pf[:, :, a:a + 2 * H, b:b + 2 * W]
    out = out + jnp.asarray(bias, jnp.float32)[None, :, None, None]
    return out.astype(x.dtype)


if __name__ == "__main__":
    key = jax.random.PRNGKey(0)
    N, C, H, W = 2, 4, 16, 16
    kx, kw, kb = jax.random.split(key, 3)
    x = jax.random.normal(kx, (N, C, H, W), dtype=jnp.float32)

    w_fixed, b_zero = init_upsample_params("learned-3x3", C)
    w_rand = 0.2 * jax.random.normal(kw, (C, 1, 3, 3), dtype=jnp.float32)
    b_rand = 0.1 * jax.random.normal(kb, (C,), dtype=jnp.float32)

    # (mode, weight, bias, mxu_dtype, tolerance)
    cases = [
        ("nearest", None, None, None, 1e-5),                       # packed matmul
        ("learned-3x3", None, None, None, 1e-5),                   # default init
        ("learned-3x3-zeropad", w_fixed, b_zero, None, 1e-5),      # fused, zero pad
        ("learned-3x3", w_fixed, b_rand, None, 1e-5),              # fused + bias
        ("learned-3x3", w_rand, b_rand, None, 1e-5),               # general fallback
        ("learned-3x3-zeropad", w_rand, b_rand, None, 1e-5),       # general, zero pad
        ("learned-3x3", w_fixed, b_zero, jnp.bfloat16, 3e-2),      # bf16 MXU option
    ]
    for mode, wgt, bia, mxu, tol in cases:
        out = jax.block_until_ready(upsample(x, mode, wgt, bia, mxu_dtype=mxu))
        wr = wgt if wgt is not None else (w_fixed if "learned-3x3" in mode else None)
        br = bia if bia is not None else (b_zero if "learned-3x3" in mode else None)
        ref = upsample_reference(x, mode, wr, br)
        assert out.shape == (N, C, 2 * H, 2 * W)
        np.testing.assert_allclose(
            np.asarray(jnp.asarray(out, jnp.float32)),
            np.asarray(jnp.asarray(ref, jnp.float32)),
            rtol=tol, atol=tol)

    # bf16 input, nearest mode: pure duplication -> exact
    xb = x.astype(jnp.bfloat16)
    ob = jax.block_until_ready(upsample(xb, "nearest"))
    rb = upsample_reference(xb, "nearest")
    np.testing.assert_allclose(
        np.asarray(jnp.asarray(ob, jnp.float32)),
        np.asarray(jnp.asarray(rb, jnp.float32)), rtol=0, atol=0)

    print("KERNEL_OK")
</pallas_src>

<mosaic_0001>
module attributes {stable_mosaic.version = 11 : i64} {
  func.func @_nearest_kernel(%arg0: i32, %arg1: memref<32x128xf32, #tpu.memory_space<vmem>>, %arg2: memref<16x32xf32, #tpu.memory_space<vmem>>, %arg3: memref<16x128xf32, #tpu.memory_space<vmem>>) attributes {dimension_semantics = [#tpu.dimension_semantics<parallel>], iteration_bounds = array<i64: 4>, scalar_prefetch = 0 : i64, scratch_operands = 0 : i64, tpu.core_type = #tpu.core_type<tc>, window_params = [{pipeline_mode = #tpu.pipeline_mode<synchronous>, transform_indices = @transform_0, window_bounds = array<i64: 32, 128>}, {transform_indices = @transform_1, window_bounds = array<i64: 16, 32>}, {transform_indices = @transform_2, window_bounds = array<i64: 16, 128>}]} {
    %c0 = arith.constant 0 : index
    %c0_0 = arith.constant 0 : index
    %0 = vector.load %arg2[%c0, %c0_0] : memref<16x32xf32, #tpu.memory_space<vmem>>, vector<16x32xf32>
    %c0_1 = arith.constant 0 : index
    %c0_2 = arith.constant 0 : index
    %1 = vector.load %arg1[%c0_1, %c0_2] : memref<32x128xf32, #tpu.memory_space<vmem>>, vector<32x128xf32>
    %cst = arith.constant dense<0.000000e+00> : vector<16x128xf32>
    %2 = tpu.matmul %0, %1, %cst {dimension_numbers = #tpu.dot_dimension_numbers<[1], [0], [0], [1], [0, 0, 1, 1], [], []>} : vector<16x32xf32>, vector<32x128xf32>, vector<16x128xf32> -> vector<16x128xf32>
    %c0_3 = arith.constant 0 : index
    %c0_4 = arith.constant 0 : index
    %3 = vector.load %arg3[%c0_3, %c0_4] : memref<16x128xf32, #tpu.memory_space<vmem>>, vector<16x128xf32>
    tpu.vector_store %arg3[%c0_3, %c0_4], %2 {strides = array<i32>} : memref<16x128xf32, #tpu.memory_space<vmem>>, vector<16x128xf32>,
    return
  }
  func.func @transform_0(%arg0: i32) -> (i32, i32) {
    %c0_i32 = arith.constant 0 : i32
    %c0_i32_0 = arith.constant 0 : i32
    %c0_i32_1 = arith.constant 0 : i32
    return %c0_i32, %c0_i32_0 : i32, i32
  }
  func.func @transform_1(%arg0: i32) -> (i32, i32) {
    %c0_i32 = arith.constant 0 : i32
    %c0_i32_0 = arith.constant 0 : i32
    return %arg0, %c0_i32 : i32, i32
  }
  func.func @transform_2(%arg0: i32) -> (i32, i32) {
    %c0_i32 = arith.constant 0 : i32
    %c0_i32_0 = arith.constant 0 : i32
    return %arg0, %c0_i32 : i32, i32
  }
}

</mosaic_0001>

<llo_original>
// kernel: tpu_custom_call.1
$region0: #{tpu_custom_call.1}
  #allocation0 [shape = 'u32[]', space=smem, size = 0x4, offset = 0x4, fixed_abs, tag = 'smem constant byte address 0x4 - core index']
  #allocation1 [shape = 'u32[72,128]{1,0:T(1,128)}', space=vmem, size = 0x9000, scoped, tag = 'internal scratch']
  %s0 = inlined_call_operand.vmem [shape: f32[32,128], index: 0, kind: input, shape index: {}]
  %s1 = inlined_call_operand.vmem [shape: f32[64,32], index: 1, kind: input, shape index: {}]
  %s2 = inlined_call_operand.hbm [shape: f32[64,128], index: 2, kind: output, shape index: {}]
  %s3 = sld [smem:[#allocation0]]
  $region41: #{tpu_custom_call.1} parent=0
    _
  %s5 = ssub.s32 1, %s3
  %s6 = scalar_select 0, %s5, %s3
  $region1: #{tpu_custom_call.1} parent=0
    #allocation2 [shape = 'u8[16384]{0}', space=vmem, size = 0x4000, scoped, tag = 'output window, operand 0']
    #allocation3 [shape = 's32[2]{0}', space=sflag, size = 0x8, scoped, tag = 'scoped memory for tpu_custom_call.1']
    %7 = vsyncpa [#allocation3], 0
    %s8 = scalar_lea.sflag [#allocation3], 1
    %9 = vsyncpa %s8, 0
    loop: start=0, step=1, limit=6
    $region2: #{tpu_custom_call.1} parent=1 // loop_pre_header
      _
    $region3: #{tpu_custom_call.1} parent=1 // loop_header
      %s11 = sphi 0, %s15
      %p12 = scmp.ge.s32.totalorder %s11, 6
      %s19 = sphi 0, %s19
      %s21 = sphi 0, %s19
      %s22 = sphi 0, %s21
      %s36 = sphi 0, %s22
      %s42 = sphi 0, %s44
      %s45 = sphi 0, %s42
      %s46 = sphi 0, %s45
      %s62 = sphi 0, %s46
      %s68 = sphi 0, %s70
      %s71 = sphi 0, %s68
      %s72 = sphi 0, %s71
      %s88 = sphi 0, %s72
    $region4: #{tpu_custom_call.1} parent=1 // loop_header_branch
      %14 = sbr.rel (%p12) target = $region8
    $region5: #{tpu_custom_call.1} parent=1 // loop_body
      %s16 = ssub.s32 %s11, 1
      %s17 = ssub.s32 %s11, 2
      %s18 = sadd.s32 %s11, 1
      %s20 = sadd.s32 %s19, 1
      %p23 = scmp.eq.s32.totalorder %s11, 3
      %p24 = scmp.ne.s32.totalorder %s19, %s21
      %p25 = scmp.eq.s32.totalorder %s11, 0
      %p26 = por %p24, %p25
      %p27 = scmp.ne.s32.totalorder %s19, %s21
      %p28 = scmp.eq.s32.totalorder %s16, 3
      %p29 = por %p27, %p28
      %p30 = scmp.ne.s32.totalorder %s21, %s22
      %p31 = scmp.eq.s32.totalorder %s16, 0
      %p32 = por %p30, %p31
      %p33 = scmp.ne.s32.totalorder %s21, %s22
      %p34 = scmp.eq.s32.totalorder %s17, 3
      %p35 = por %p33, %p34
      %p37 = scmp.ne.s32.totalorder %s22, %s36
      %p38 = scmp.eq.s32.totalorder %s17, 0
      %p39 = por %p37, %p38
      %s40 = ssub.s32 %s11, %s18
      %p41 = scmp.eq.s32.totalorder %s40, 0
      %s43 = sadd.s32 %s42, 1
      %s44 = scalar_select %p41, %s42, %s43
      %p47 = pneg %p41
      %p48 = scmp.eq.s32.totalorder %s11, 3
      %p49 = por %p47, %p48
      %p50 = scmp.ne.s32.totalorder %s42, %s45
      %p51 = scmp.eq.s32.totalorder %s11, 0
      %p52 = por %p50, %p51
      %p53 = scmp.ne.s32.totalorder %s42, %s45
      %p54 = scmp.eq.s32.totalorder %s16, 3
      %p55 = por %p53, %p54
      %p56 = scmp.ne.s32.totalorder %s45, %s46
      %p57 = scmp.eq.s32.totalorder %s16, 0
      %p58 = por %p56, %p57
      %p59 = scmp.ne.s32.totalorder %s45, %s46
      %p60 = scmp.eq.s32.totalorder %s17, 3
      %p61 = por %p59, %p60
      %p63 = scmp.ne.s32.totalorder %s46, %s62
      %p64 = scmp.eq.s32.totalorder %s17, 0
      %p65 = por %p63, %p64
      %s66 = ssub.s32 %s11, %s18
      %p67 = scmp.eq.s32.totalorder %s66, 0
      %s69 = sadd.s32 %s68, 1
      %s70 = scalar_select %p67, %s68, %s69
      %p73 = pneg %p67
      %p74 = scmp.eq.s32.totalorder %s11, 3
      %p75 = por %p73, %p74
      %p76 = scmp.ne.s32.totalorder %s68, %s71
      %p77 = scmp.eq.s32.totalorder %s11, 0
      %p78 = por %p76, %p77
      %p79 = scmp.ne.s32.totalorder %s68, %s71
      %p80 = scmp.eq.s32.totalorder %s16, 3
      %p81 = por %p79, %p80
      %p82 = scmp.ne.s32.totalorder %s71, %s72
      %p83 = scmp.eq.s32.totalorder %s16, 0
      %p84 = por %p82, %p83
      %p85 = scmp.ne.s32.totalorder %s71, %s72
      %p86 = scmp.eq.s32.totalorder %s17, 3
      %p87 = por %p85, %p86
      %p89 = scmp.ne.s32.totalorder %s72, %s88
      %p90 = scmp.eq.s32.totalorder %s17, 0
      %p91 = por %p89, %p90
      %p92 = scmp.le.s32.totalorder 1, %s11
      %p93 = scmp.lt.s32.totalorder %s11, 5
      %p94 = pnand %p92, %p93
      %p95 = pneg %p94
      // Predicated region
      $region9: #{tpu_custom_call.1} parent=5 // pred_check
        _
      $region10: #{tpu_custom_call.1} parent=5 // pred_check_branch
        %97 = sbr.rel (%p94) target = $region12
      $region11: #{tpu_custom_call.1} parent=5 // pred_region
        %s98 = ssub.s32 %s11, 1
        // Predicated region
        $region13: #{tpu_custom_call.1} parent=11 // pred_check
          %p99 = pneg %p32
        $region14: #{tpu_custom_call.1} parent=11 // pred_check_branch
          %101 = sbr.rel (%p99) target = $region16
        $region15: #{tpu_custom_call.1} parent=11 // pred_region
          _
        $region16: #{tpu_custom_call.1} parent=11 // pred_fallthru
          _
      $region12: #{tpu_custom_call.1} parent=5 // pred_fallthru
        _
      %p102 = scmp.lt.s32.totalorder %s11, 4
      // Predicated region
      $region17: #{tpu_custom_call.1} parent=5 // pred_check
        %p103 = pneg %p102
      $region18: #{tpu_custom_call.1} parent=5 // pred_check_branch
        %105 = sbr.rel (%p103) target = $region20
      $region19: #{tpu_custom_call.1} parent=5 // pred_region
        // Predicated region
        $region21: #{tpu_custom_call.1} parent=19 // pred_check
          %p106 = pneg %p52
        $region22: #{tpu_custom_call.1} parent=19 // pred_check_branch
          %108 = sbr.rel (%p106) target = $region24
        $region23: #{tpu_custom_call.1} parent=19 // pred_region
          %s109 = smul.u32 2, %s11
          %p110 = scmp.lt.s32.totalorder %s109, 7
          %s111 = scalar_select %p110, %s109, 7
          %s112 = smul.addr %s111, 8
          %s113 = scalar_lea.vmem %s1, %s112
          %s114 = smul.u32 2, %s11
        $region24: #{tpu_custom_call.1} parent=19 // pred_fallthru
          _
      $region20: #{tpu_custom_call.1} parent=5 // pred_fallthru
        _
      %p115 = scmp.le.s32.totalorder 1, %s11
      %p116 = scmp.lt.s32.totalorder %s11, 5
      %p117 = pnand %p115, %p116
      %p118 = pneg %p117
      // Predicated region
      $region25: #{tpu_custom_call.1} parent=5 // pred_check
        _
      $region26: #{tpu_custom_call.1} parent=5 // pred_check_branch
        %120 = sbr.rel (%p117) target = $region28
      $region27: #{tpu_custom_call.1} parent=5 // pred_region
        %s121 = ssub.s32 %s11, 1
        %p122 = pneg %p32
        %p123 = pneg %p29
        %s124 = smul.u32 2, %s16
        %p125 = scmp.lt.s32.totalorder %s124, 7
        %s126 = scalar_select %p125, %s124, 7
        %s127 = smul.addr %s126, 8
        %s128 = scalar_lea.vmem %s1, %s127
        %p129 = pneg %p58
        %p130 = pneg %p55
        %p131 = pneg %p84
        %p132 = pneg %p81
        %s133 = sand.u32 %s71, 1
        %s134 = scalar_lea.sflag [#allocation3], %s133
        %s135 = sand.u32 %s71, 1
        %s136 = smul.addr %s135, 16
        %s137 = scalar_lea.vmem [#allocation2], %s136
        %s138 = smul.u32 2, %s16
        %p139 = scmp.lt.s32.totalorder %s138, 7
        %s140 = scalar_select %p139, %s138, 7
        %s141 = smul.addr %s140, 8
        %s142 = scalar_lea.vmem %s1, %s141
        %s143 = smul.u32 2, %s16
        %s144 = smul.u32 2, %s16
        %v145 = vld [vmem:[%s142] sm:$0xff]
        %v146 = vld [vmem:[%s142 + $0x8] sm:$0xff]
        %v147 = vld [vmem:[%s0] sm:$0xff]
        %v148 = vld [vmem:[%s0 + $0x8] sm:$0xff]
        %v149 = vld [vmem:[%s0 + $0x10] sm:$0xff]
        %v150 = vld [vmem:[%s0 + $0x18] sm:$0xff]
        %vm151 = vcmask 261120
        %v153 = vsel %vm151, %v145, 0
        %v156 = vsel %vm151, %v146, 0
        %158 = vmatpush.msra.mxu0 0.0
        %159 = vmatpush.msra.mxu0 0.0
        %160 = vmatpush.msra.mxu0 0.0
        %161 = vmatpush.msra.mxu0 0.0
        %162 = vmatpush.msra.mxu0 0.0
        %163 = vmatpush.msra.mxu0 0.0
        %164 = vmatpush.msra.mxu0 0.0
        %165 = vmatpush.msra.mxu0 0.0
        %166 = vmatpush.msra.mxu0 0.0
        %167 = vmatpush.msra.mxu0 0.0
        %168 = vmatpush.msra.mxu0 0.0
        %169 = vmatpush.msra.mxu0 0.0
        %170 = vmatpush.msra.mxu0 %v150
        %171 = vmatpush.msra.mxu0 %v149
        %172 = vmatpush.msra.mxu0 %v148
        %173 = vmatpush.msra.mxu0 %v147
        %174 = vmatmul.f32.gmra.mxu0 %v153
        %v175 = vpop.f32.mrf.mxu0
        %v176 = vadd.f32 0.0, %v175
        %177 = vmatmul.f32.gmra.mxu0 %v156
        %v178 = vpop.f32.mrf.mxu0
        %v179 = vadd.f32 0.0, %v178
        %180 = vdwg.mxu0
        %181 = vst [vmem:[%s137] sm:$0xff] %v176
        %182 = vst [vmem:[%s137 + $0x8] sm:$0xff] %v179
        %s183 = sand.u32 %s71, 1
        %s184 = scalar_lea.sflag [#allocation3], %s183
        %s185 = sand.u32 %s71, 1
        %s186 = smul.addr %s185, 16
        %s187 = scalar_lea.vmem [#allocation2], %s186
        // Predicated region
        $region29: #{tpu_custom_call.1} parent=27 // pred_check
          %p188 = pneg %p81
        $region30: #{tpu_custom_call.1} parent=27 // pred_check_branch
          %190 = sbr.rel (%p188) target = $region32
        $region31: #{tpu_custom_call.1} parent=27 // pred_region
          %s191 = smul.u32 2, %s16
          %193 = vsyncadd %s184, 0
          %s194 = smul.addr %s191, 8
          %s195 = scalar_lea.hbm %s2, %s194
          %s196 = sshll.u32 %s187, 4
          %s197 = int_to_ptr.vmem [resolvable:$true] %s196
          %s198 = sshll.u32 %s195, 4
          %s199 = int_to_ptr.hbm [resolvable:$true] %s198
          %204 = dma.vmem_to_hbm [thread:$0]  %s197, 256, %s199, %s184, 128, 128, 8
        $region32: #{tpu_custom_call.1} parent=27 // pred_fallthru
          _
      $region28: #{tpu_custom_call.1} parent=5 // pred_fallthru
        _
      %p205 = scmp.le.s32.totalorder 2, %s11
      // Predicated region
      $region33: #{tpu_custom_call.1} parent=5 // pred_check
        %p206 = pneg %p205
      $region34: #{tpu_custom_call.1} parent=5 // pred_check_branch
        %208 = sbr.rel (%p206) target = $region36
      $region35: #{tpu_custom_call.1} parent=5 // pred_region
        %s209 = ssub.s32 %s11, 2
        // Predicated region
        $region37: #{tpu_custom_call.1} parent=35 // pred_check
          %p210 = pneg %p87
        $region38: #{tpu_custom_call.1} parent=35 // pred_check_branch
          %212 = sbr.rel (%p210) target = $region40
        $region39: #{tpu_custom_call.1} parent=35 // pred_region
          %s213 = sand.u32 %s72, 1
          %s214 = scalar_lea.sflag [#allocation3], %s213
          %s215 = sand.u32 %s72, 1
          %s216 = smul.addr %s215, 16
          %s217 = scalar_lea.vmem [#allocation2], %s216
          %219 = dma.done %s214, 256
        $region40: #{tpu_custom_call.1} parent=35 // pred_fallthru
          _
      $region36: #{tpu_custom_call.1} parent=5 // pred_fallthru
        _
    $region6: #{tpu_custom_call.1} parent=1 // loop_footer
      %s15 = sadd.s32 1, %s11
    $region7: #{tpu_custom_call.1} parent=1 // loop_footer_branch
      %10 = sbr.rel target = $region3
    $region8: #{tpu_custom_call.1} parent=1 // loop_exit
      _
    %220 = vsyncpa [#allocation3], 1
    %s221 = scalar_lea.sflag [#allocation3], 1
    %222 = vsyncpa %s221, 1

</llo_original>
